<compile_context>
chip_gen: v6e
topology: v6e:2x2x1
jax: 0.10.0
libtpu: 0.0.40
codegen_flags: <defaults>
</compile_context>

<pallas_src>
import jax
import jax.numpy as jnp
from jax.experimental import pallas as pl
from jax.experimental.pallas import tpu as pltpu


def _siglu_kernel(a_ref, b_ref, o_ref):
    # a_ref, b_ref, o_ref: (tm, tn) tiles. Compute in f32, cast back on store.
    a = a_ref[...].astype(jnp.float32)
    b = b_ref[...].astype(jnp.float32)
    # silu(b) = b * sigmoid(b). exp + reciprocal keeps the transcendental work on
    # the EUP slot (free in this HBM-bound kernel); exact reciprocal so f32
    # results match the reference to ~1 ulp.
    sig = pl.reciprocal(1.0 + jnp.exp(-b))
    o_ref[...] = (a * (b * sig)).astype(o_ref.dtype)


def _round_up(x, n):
    return ((x + n - 1) // n) * n


def _pick_tn(h):
    """Column tile for the lane-aligned path (h % 128 == 0). Must divide h,
    because the gate half is addressed via a block-index offset."""
    if h <= 2048:
        return h
    # Largest 128-multiple divisor of h that is <= 2048.
    t = 2048
    while t >= 128 and h % t != 0:
        t -= 128
    if t >= 512:
        return t
    # Awkward H (e.g. 17*128): prefer one full-width half block over 128/256-wide
    # strided tiles, unless H is so large it would blow the VMEM tile budget.
    return h if h <= 8192 else max(t, 128)


def siglu(x, *, tm=None, tn=None, vmem_limit_bytes=None):
    """x: (..., 2H) -> (..., H), computed with a Pallas TPU kernel."""
    orig_shape = x.shape
    two_h = orig_shape[-1]
    assert two_h % 2 == 0, "last dim must be even (stacked channel halves)"
    h = two_h // 2

    x2d = x.reshape(-1, two_h)  # contiguous reshape: free, no HBM pass
    m = x2d.shape[0]

    dtype_bytes = jnp.dtype(x.dtype).itemsize
    # Sublane packing: 8 rows for 4-byte, 16 for 2-byte, 32 for 1-byte dtypes.
    sublane = max(8, 32 // max(dtype_bytes, 1))

    lane_split_ok = (h % 128 == 0)

    # ---- column tile ----
    if tn is None:
        tn = _pick_tn(h) if lane_split_ok else h
    if lane_split_ok:
        assert h % tn == 0 and (tn % 128 == 0 or tn == h)
    else:
        tn = h  # fallback path uses the full half-width block

    # ---- generation-aware VMEM tile budget ----
    try:
        vmem_cap = int(pltpu.get_tpu_info().vmem_capacity_bytes)
    except Exception:
        vmem_cap = 64 * 1024 * 1024  # conservative: v7x per-TC VMEM
    # Double-buffered footprint per grid step ~= 2*(a + b + out) = 6*tm*tn*bytes.
    tile_budget = (40 if vmem_cap >= 96 * 1024 * 1024 else 24) * 1024 * 1024

    # ---- row tile ----
    if tm is None:
        bytes_per_row = 6 * tn * dtype_bytes
        tm = max(sublane, tile_budget // bytes_per_row)
        tm = min(tm, 2048)
        tm = max(sublane, (tm // sublane) * sublane)
    tm = min(tm, _round_up(m, sublane))  # don't tile wider than the row count
    assert tm % sublane == 0

    grid_rows = pl.cdiv(m, tm)
    grid_cols = h // tn if lane_split_ok else 1

    # ---- ensure >=2 grid steps along a parallel axis when possible, so both
    #      v7x TensorCores get work (no effect on single-TC v5e/v6e) ----
    if grid_rows == 1 and grid_cols == 1:
        if m > sublane:
            tm = sublane * max(1, (m // 2) // sublane)
            grid_rows = pl.cdiv(m, tm)
        elif lane_split_ok and h >= 256:
            t = (h // 2) // 128 * 128
            while t >= 128 and h % t != 0:
                t -= 128
            if t >= 128:
                tn = t
                grid_cols = h // tn

    # ---- VMEM request sized to the actual tile footprint (+ slack) ----
    if vmem_limit_bytes is None:
        tile_bytes = 6 * tm * tn * dtype_bytes
        vmem_limit_bytes = min(vmem_cap,
                               max(16 * 1024 * 1024, tile_bytes + 4 * 1024 * 1024))

    out_shape = jax.ShapeDtypeStruct((m, h), x.dtype)
    compiler_params = pltpu.CompilerParams(
        dimension_semantics=("parallel", "parallel"),
        vmem_limit_bytes=int(vmem_limit_bytes),
    )

    if lane_split_ok:
        # Fast path: both halves come straight out of the same (m, 2H) slab via
        # block-offset index maps -> no wrapper copies, lane-aligned DMAs only.
        h_blocks = h // tn  # column-block offset of the gate half inside x2d
        out2d = pl.pallas_call(
            _siglu_kernel,
            out_shape=out_shape,
            grid_spec=pltpu.PrefetchScalarGridSpec(
                num_scalar_prefetch=0,
                grid=(grid_rows, grid_cols),
                in_specs=[
                    pl.BlockSpec((tm, tn), lambda i, j: (i, j)),                    # value half
                    pl.BlockSpec((tm, tn), lambda i, j, hb=h_blocks: (i, j + hb)),  # gate half
                ],
                out_specs=pl.BlockSpec((tm, tn), lambda i, j: (i, j)),
            ),
            compiler_params=compiler_params,
        )(x2d, x2d)  # same slab twice; BlockSpecs select the two halves
    else:
        # Fallback (H not a multiple of 128): split in the wrapper so the kernel
        # never does lane-unaligned slicing (which forces Mosaic relayout copies).
        # TODO(synk): replace the wrapper split with a pl.Element column offset /
        # manual strided DMA on the gate half to avoid the extra wrapper copy.
        a2d = x2d[:, :h]
        b2d = x2d[:, h:]
        out2d = pl.pallas_call(
            _siglu_kernel,
            out_shape=out_shape,
            grid_spec=pltpu.PrefetchScalarGridSpec(
                num_scalar_prefetch=0,
                grid=(grid_rows, 1),
                in_specs=[
                    pl.BlockSpec((tm, h), lambda i, j: (i, j)),
                    pl.BlockSpec((tm, h), lambda i, j: (i, j)),
                ],
                out_specs=pl.BlockSpec((tm, h), lambda i, j: (i, j)),
            ),
            compiler_params=compiler_params,
        )(a2d, b2d)

    return out2d.reshape(*orig_shape[:-1], h)


def siglu_ref(x):
    h = x.shape[-1] // 2
    a, b = x[..., :h], x[..., h:]
    return a * (b * jax.nn.sigmoid(b))


if __name__ == "__main__":
    key = jax.random.PRNGKey(0)

    # Small shapes consistent with the module: batch=2, seq=8, stacked hidden=2*128.
    B, S, H = 2, 8, 128
    x = jax.random.normal(key, (B, S, 2 * H), dtype=jnp.float32)
    out = jax.block_until_ready(siglu(x))
    ref = siglu_ref(x)
    assert out.shape == (B, S, H), out.shape
    assert jnp.allclose(out, ref, atol=1e-5, rtol=1e-5), "mismatch vs reference (f32)"

    # Ragged-row + bf16 path (rows not divisible by the row tile -> masked writeback).
    x2 = jax.random.normal(jax.random.PRNGKey(1), (3, 7, 2 * H), dtype=jnp.bfloat16)
    out2 = jax.block_until_ready(siglu(x2))
    ref2 = siglu_ref(x2.astype(jnp.float32)).astype(jnp.bfloat16)
    assert out2.shape == (3, 7, H), out2.shape
    assert jnp.allclose(out2.astype(jnp.float32), ref2.astype(jnp.float32),
                        atol=2e-2, rtol=2e-2), "mismatch vs reference (bf16)"

    # Non-lane-aligned hidden size exercises the wrapper-split fallback path.
    H3 = 96
    x3 = jax.random.normal(jax.random.PRNGKey(2), (2, 5, 2 * H3), dtype=jnp.float32)
    out3 = jax.block_until_ready(siglu(x3))
    ref3 = siglu_ref(x3)
    assert out3.shape == (2, 5, H3), out3.shape
    assert jnp.allclose(out3, ref3, atol=1e-5, rtol=1e-5), "mismatch vs reference (fallback)"

    print("KERNEL_OK")
</pallas_src>

<mosaic_0001>
module attributes {stable_mosaic.version = 11 : i64} {
  func.func @_siglu_kernel(%arg0: i32, %arg1: i32, %arg2: memref<8x128xf32, #tpu.memory_space<vmem>>, %arg3: memref<8x128xf32, #tpu.memory_space<vmem>>, %arg4: memref<8x128xf32, #tpu.memory_space<vmem>>) attributes {dimension_semantics = [#tpu.dimension_semantics<parallel>, #tpu.dimension_semantics<parallel>], iteration_bounds = array<i64: 2, 1>, scalar_prefetch = 0 : i64, scratch_operands = 0 : i64, tpu.core_type = #tpu.core_type<tc>, window_params = [{transform_indices = @transform_0, window_bounds = array<i64: 8, 128>}, {transform_indices = @transform_1, window_bounds = array<i64: 8, 128>}, {transform_indices = @transform_2, window_bounds = array<i64: 8, 128>}]} {
    %c0 = arith.constant 0 : index
    %c0_0 = arith.constant 0 : index
    %0 = vector.load %arg2[%c0, %c0_0] : memref<8x128xf32, #tpu.memory_space<vmem>>, vector<8x128xf32>
    %c0_1 = arith.constant 0 : index
    %c0_2 = arith.constant 0 : index
    %1 = vector.load %arg3[%c0_1, %c0_2] : memref<8x128xf32, #tpu.memory_space<vmem>>, vector<8x128xf32>
    %cst = arith.constant 0.000000e+00 : f32
    %2 = vector.broadcast %cst : f32 to vector<8x128xf32>
    %3 = arith.subf %2, %1 : vector<8x128xf32>
    %4 = math.exp %3 : vector<8x128xf32>
    %cst_3 = arith.constant 1.000000e+00 : f32
    %5 = vector.broadcast %cst_3 : f32 to vector<8x128xf32>
    %6 = arith.addf %5, %4 : vector<8x128xf32>
    %7 = tpu.reciprocal %6 : vector<8x128xf32> -> vector<8x128xf32>
    %8 = arith.mulf %1, %7 : vector<8x128xf32>
    %9 = arith.mulf %0, %8 : vector<8x128xf32>
    %c0_4 = arith.constant 0 : index
    %c0_5 = arith.constant 0 : index
    %10 = vector.load %arg4[%c0_4, %c0_5] : memref<8x128xf32, #tpu.memory_space<vmem>>, vector<8x128xf32>
    tpu.vector_store %arg4[%c0_4, %c0_5], %9 {strides = array<i32>} : memref<8x128xf32, #tpu.memory_space<vmem>>, vector<8x128xf32>,
    return
  }
  func.func @transform_0(%arg0: i32, %arg1: i32) -> (i32, i32) {
    %c0_i32 = arith.constant 0 : i32
    return %arg0, %arg1 : i32, i32
  }
  func.func @transform_1(%arg0: i32, %arg1: i32) -> (i32, i32) {
    %c1_i32 = arith.constant 1 : i32
    %0 = arith.addi %arg1, %c1_i32 : i32
    %c0_i32 = arith.constant 0 : i32
    return %arg0, %0 : i32, i32
  }
  func.func @transform_2(%arg0: i32, %arg1: i32) -> (i32, i32) {
    %c0_i32 = arith.constant 0 : i32
    return %arg0, %arg1 : i32, i32
  }
}

</mosaic_0001>

<llo_original>
// kernel: tpu_custom_call.1
$region0: #{tpu_custom_call.1}
  #allocation0 [shape = 'u32[]', space=smem, size = 0x4, offset = 0x4, fixed_abs, tag = 'smem constant byte address 0x4 - core index']
  #allocation1 [shape = 'u32[144,128]{1,0:T(1,128)}', space=vmem, size = 0x12000, scoped, tag = 'internal scratch']
  %s0 = inlined_call_operand.hbm [shape: f32[16,256], index: 0, kind: input, shape index: {}]
  %s1 = inlined_call_operand.hbm [shape: f32[16,256], index: 1, kind: input, shape index: {}]
  %s2 = inlined_call_operand.hbm [shape: f32[16,128], index: 2, kind: output, shape index: {}]
  %s3 = sld [smem:[#allocation0]]
  $region49: #{tpu_custom_call.1} parent=0
    _
  %s5 = ssub.s32 1, %s3
  %s6 = scalar_select 0, %s5, %s3
  $region1: #{tpu_custom_call.1} parent=0
    #allocation2 [shape = 'u8[8192]{0}', space=vmem, size = 0x2000, scoped, tag = 'input window, operand 0']
    #allocation3 [shape = 's32[2]{0}', space=sflag, size = 0x8, scoped, tag = 'scoped memory for tpu_custom_call.1']
    #allocation4 [shape = 's32[2]{0}', space=sflag, size = 0x8, scoped, tag = 'scoped memory for tpu_custom_call.1']
    #allocation5 [shape = 'u8[8192]{0}', space=vmem, size = 0x2000, scoped, tag = 'input window, operand 1']
    #allocation6 [shape = 's32[2]{0}', space=sflag, size = 0x8, scoped, tag = 'scoped memory for tpu_custom_call.1']
    #allocation7 [shape = 'u8[8192]{0}', space=vmem, size = 0x2000, scoped, tag = 'output window, operand 0']
    %7 = vsyncpa [#allocation3], 0
    %s8 = scalar_lea.sflag [#allocation3], 1
    %9 = vsyncpa %s8, 0
    %10 = vsyncpa [#allocation6], 0
    %s11 = scalar_lea.sflag [#allocation6], 1
    %12 = vsyncpa %s11, 0
    %13 = vsyncpa [#allocation4], 0
    %s14 = scalar_lea.sflag [#allocation4], 1
    %15 = vsyncpa %s14, 0
    loop: start=0, step=1, limit=4
    $region2: #{tpu_custom_call.1} parent=1 // loop_pre_header
      _
    $region3: #{tpu_custom_call.1} parent=1 // loop_header
      %s17 = sphi 0, %s21
      %p18 = scmp.ge.s32.totalorder %s17, 4
      %s24 = sphi 0, %s36
      %s25 = sphi 0, %s32
      %s26 = sphi 0, %s24
      %s27 = sphi 0, %s25
      %s28 = sphi 0, %s26
      %s29 = sphi 0, %s27
      %s41 = sphi 0, %s43
      %s44 = sphi 0, %s41
      %s45 = sphi 0, %s44
      %s61 = sphi 0, %s45
      %s71 = sphi 0, %s73
      %s74 = sphi 0, %s71
      %s75 = sphi 0, %s74
      %s91 = sphi 0, %s75
      %s99 = sphi 0, %s101
      %s102 = sphi 0, %s99
      %s103 = sphi 0, %s102
      %s119 = sphi 0, %s103
    $region4: #{tpu_custom_call.1} parent=1 // loop_header_branch
      %20 = sbr.rel (%p18) target = $region8
    $region5: #{tpu_custom_call.1} parent=1 // loop_body
      %s22 = ssub.s32 %s17, 1
      %s23 = ssub.s32 %s17, 2
      %s30 = sadd.s32 1, %s25
      %p31 = scmp.ge.s32.totalorder %s30, 1
      %s32 = scalar_select %p31, 0, %s30
      %s33 = sadd.s32 1, %s24
      %s34 = scalar_select %p31, %s33, %s24
      %p35 = scmp.ge.s32.totalorder %s34, 2
      %s36 = scalar_select %p35, 0, %s34
      %s37 = ssub.s32 %s24, %s36
      %s38 = ssub.s32 %s25, %s32
      %s39 = sor.u32 %s37, %s38
      %p40 = scmp.eq.s32.totalorder %s39, 0
      %s42 = sadd.s32 %s41, 1
      %s43 = scalar_select %p40, %s41, %s42
      %p46 = pneg %p40
      %p47 = scmp.eq.s32.totalorder %s17, 1
      %p48 = por %p46, %p47
      %p49 = scmp.ne.s32.totalorder %s41, %s44
      %p50 = scmp.eq.s32.totalorder %s17, 0
      %p51 = por %p49, %p50
      %p52 = scmp.ne.s32.totalorder %s41, %s44
      %p53 = scmp.eq.s32.totalorder %s22, 1
      %p54 = por %p52, %p53
      %p55 = scmp.ne.s32.totalorder %s44, %s45
      %p56 = scmp.eq.s32.totalorder %s22, 0
      %p57 = por %p55, %p56
      %p58 = scmp.ne.s32.totalorder %s44, %s45
      %p59 = scmp.eq.s32.totalorder %s23, 1
      %p60 = por %p58, %p59
      %p62 = scmp.ne.s32.totalorder %s45, %s61
      %p63 = scmp.eq.s32.totalorder %s23, 0
      %p64 = por %p62, %p63
      %s65 = sadd.s32 %s25, 1
      %s66 = sadd.s32 %s32, 1
      %s67 = ssub.s32 %s24, %s36
      %s68 = ssub.s32 %s65, %s66
      %s69 = sor.u32 %s67, %s68
      %p70 = scmp.eq.s32.totalorder %s69, 0
      %s72 = sadd.s32 %s71, 1
      %s73 = scalar_select %p70, %s71, %s72
      %p76 = pneg %p70
      %p77 = scmp.eq.s32.totalorder %s17, 1
      %p78 = por %p76, %p77
      %p79 = scmp.ne.s32.totalorder %s71, %s74
      %p80 = scmp.eq.s32.totalorder %s17, 0
      %p81 = por %p79, %p80
      %p82 = scmp.ne.s32.totalorder %s71, %s74
      %p83 = scmp.eq.s32.totalorder %s22, 1
      %p84 = por %p82, %p83
      %p85 = scmp.ne.s32.totalorder %s74, %s75
      %p86 = scmp.eq.s32.totalorder %s22, 0
      %p87 = por %p85, %p86
      %p88 = scmp.ne.s32.totalorder %s74, %s75
      %p89 = scmp.eq.s32.totalorder %s23, 1
      %p90 = por %p88, %p89
      %p92 = scmp.ne.s32.totalorder %s75, %s91
      %p93 = scmp.eq.s32.totalorder %s23, 0
      %p94 = por %p92, %p93
      %s95 = ssub.s32 %s24, %s36
      %s96 = ssub.s32 %s25, %s32
      %s97 = sor.u32 %s95, %s96
      %p98 = scmp.eq.s32.totalorder %s97, 0
      %s100 = sadd.s32 %s99, 1
      %s101 = scalar_select %p98, %s99, %s100
      %p104 = pneg %p98
      %p105 = scmp.eq.s32.totalorder %s17, 1
      %p106 = por %p104, %p105
      %p107 = scmp.ne.s32.totalorder %s99, %s102
      %p108 = scmp.eq.s32.totalorder %s17, 0
      %p109 = por %p107, %p108
      %p110 = scmp.ne.s32.totalorder %s99, %s102
      %p111 = scmp.eq.s32.totalorder %s22, 1
      %p112 = por %p110, %p111
      %p113 = scmp.ne.s32.totalorder %s102, %s103
      %p114 = scmp.eq.s32.totalorder %s22, 0
      %p115 = por %p113, %p114
      %p116 = scmp.ne.s32.totalorder %s102, %s103
      %p117 = scmp.eq.s32.totalorder %s23, 1
      %p118 = por %p116, %p117
      %p120 = scmp.ne.s32.totalorder %s103, %s119
      %p121 = scmp.eq.s32.totalorder %s23, 0
      %p122 = por %p120, %p121
      %p123 = scmp.le.s32.totalorder 1, %s17
      %p124 = scmp.lt.s32.totalorder %s17, 3
      %p125 = pnand %p123, %p124
      %p126 = pneg %p125
      // Predicated region
      $region9: #{tpu_custom_call.1} parent=5 // pred_check
        _
      $region10: #{tpu_custom_call.1} parent=5 // pred_check_branch
        %128 = sbr.rel (%p125) target = $region12
      $region11: #{tpu_custom_call.1} parent=5 // pred_region
        %s129 = ssub.s32 %s17, 1
      $region12: #{tpu_custom_call.1} parent=5 // pred_fallthru
        _
      %p130 = scmp.lt.s32.totalorder %s17, 2
      // Predicated region
      $region13: #{tpu_custom_call.1} parent=5 // pred_check
        %p131 = pneg %p130
      $region14: #{tpu_custom_call.1} parent=5 // pred_check_branch
        %133 = sbr.rel (%p131) target = $region16
      $region15: #{tpu_custom_call.1} parent=5 // pred_region
        // Predicated region
        $region17: #{tpu_custom_call.1} parent=15 // pred_check
          %p134 = pneg %p51
        $region18: #{tpu_custom_call.1} parent=15 // pred_check_branch
          %136 = sbr.rel (%p134) target = $region20
        $region19: #{tpu_custom_call.1} parent=15 // pred_region
          %s137 = sand.u32 %s41, 1
          %s138 = scalar_lea.sflag [#allocation3], %s137
          %s139 = sand.u32 %s41, 1
          %s140 = smul.addr %s139, 8
          %s141 = scalar_lea.vmem [#allocation2], %s140
          %s143 = ssub.s32 128, 128
          %144 = vsyncadd %s138, %s143
          %s145 = smul.addr %s24, 2
          %s146 = sadd.s32 %s25, %s145
          %s147 = smul.addr %s146, 128
          %s148 = scalar_lea.hbm %s0, %s147
          %s150 = sshll.u32 %s141, 4
          %s151 = int_to_ptr.vmem [resolvable:$true] %s150
          %153 = dma.hbm_to_vmem [thread:$0]  %s148, 128, %s151, %s138
        $region20: #{tpu_custom_call.1} parent=15 // pred_fallthru
          _
        // Predicated region
        $region21: #{tpu_custom_call.1} parent=15 // pred_check
          %p154 = pneg %p81
        $region22: #{tpu_custom_call.1} parent=15 // pred_check_branch
          %156 = sbr.rel (%p154) target = $region24
        $region23: #{tpu_custom_call.1} parent=15 // pred_region
          %s157 = sand.u32 %s71, 1
          %s158 = scalar_lea.sflag [#allocation6], %s157
          %s159 = sand.u32 %s71, 1
          %s160 = smul.addr %s159, 8
          %s161 = scalar_lea.vmem [#allocation5], %s160
          %s162 = sadd.s32 %s25, 1
          %s164 = ssub.s32 128, 128
          %165 = vsyncadd %s158, %s164
          %s166 = smul.addr %s24, 2
          %s167 = sadd.s32 %s162, %s166
          %s168 = smul.addr %s167, 128
          %s169 = scalar_lea.hbm %s1, %s168
          %s171 = sshll.u32 %s161, 4
          %s172 = int_to_ptr.vmem [resolvable:$true] %s171
          %174 = dma.hbm_to_vmem [thread:$0]  %s169, 128, %s172, %s158
        $region24: #{tpu_custom_call.1} parent=15 // pred_fallthru
          _
      $region16: #{tpu_custom_call.1} parent=5 // pred_fallthru
        _
      %p175 = scmp.le.s32.totalorder 1, %s17
      %p176 = scmp.lt.s32.totalorder %s17, 3
      %p177 = pnand %p175, %p176
      %p178 = pneg %p177
      // Predicated region
      $region25: #{tpu_custom_call.1} parent=5 // pred_check
        _
      $region26: #{tpu_custom_call.1} parent=5 // pred_check_branch
        %180 = sbr.rel (%p177) target = $region28
      $region27: #{tpu_custom_call.1} parent=5 // pred_region
        %s181 = ssub.s32 %s17, 1
        %s182 = sand.u32 %s44, 1
        %s183 = scalar_lea.sflag [#allocation3], %s182
        %s184 = sand.u32 %s44, 1
        %s185 = smul.addr %s184, 8
        %s186 = scalar_lea.vmem [#allocation2], %s185
        // Predicated region
        $region29: #{tpu_custom_call.1} parent=27 // pred_check
          %p187 = pneg %p57
        $region30: #{tpu_custom_call.1} parent=27 // pred_check_branch
          %189 = sbr.rel (%p187) target = $region32
        $region31: #{tpu_custom_call.1} parent=27 // pred_region
          %190 = dma.done %s183, 128
        $region32: #{tpu_custom_call.1} parent=27 // pred_fallthru
          _
        %s191 = sand.u32 %s74, 1
        %s192 = scalar_lea.sflag [#allocation6], %s191
        %s193 = sand.u32 %s74, 1
        %s194 = smul.addr %s193, 8
        %s195 = scalar_lea.vmem [#allocation5], %s194
        // Predicated region
        $region33: #{tpu_custom_call.1} parent=27 // pred_check
          %p196 = pneg %p87
        $region34: #{tpu_custom_call.1} parent=27 // pred_check_branch
          %198 = sbr.rel (%p196) target = $region36
        $region35: #{tpu_custom_call.1} parent=27 // pred_region
          %199 = dma.done %s192, 128
        $region36: #{tpu_custom_call.1} parent=27 // pred_fallthru
          _
        %s200 = sand.u32 %s44, 1
        %s201 = scalar_lea.sflag [#allocation3], %s200
        %s202 = sand.u32 %s44, 1
        %s203 = smul.addr %s202, 8
        %s204 = scalar_lea.vmem [#allocation2], %s203
        %p205 = pneg %p57
        %p206 = pneg %p54
        %s207 = sand.u32 %s74, 1
        %s208 = scalar_lea.sflag [#allocation6], %s207
        %s209 = sand.u32 %s74, 1
        %s210 = smul.addr %s209, 8
        %s211 = scalar_lea.vmem [#allocation5], %s210
        %p212 = pneg %p87
        %p213 = pneg %p84
        %p214 = pneg %p115
        %p215 = pneg %p112
        %s216 = sand.u32 %s102, 1
        %s217 = scalar_lea.sflag [#allocation4], %s216
        %s218 = sand.u32 %s102, 1
        %s219 = smul.addr %s218, 8
        %s220 = scalar_lea.vmem [#allocation7], %s219
        %s221 = sadd.s32 %s27, 1
        %v222 = vld [vmem:[%s186] sm:$0xff]
        %v223 = vld [vmem:[%s195] sm:$0xff]
        %v224 = vsub.f32 0.0, %v223
        %v225 = vmul.f32 %v224, 1.442695
        %v226 = vpow.pop %v225
        %v227 = vadd.f32 %v226, 1.0
        %v228 = vrcp.pop %v227
        %v229 = vmul.f32 %v223, %v228
        %v230 = vmul.f32 %v222, %v229
        %231 = vst [vmem:[%s220] sm:$0xff] %v230
        %s232 = sand.u32 %s102, 1
        %s233 = scalar_lea.sflag [#allocation4], %s232
        %s234 = sand.u32 %s102, 1
        %s235 = smul.addr %s234, 8
        %s236 = scalar_lea.vmem [#allocation7], %s235
        // Predicated region
        $region37: #{tpu_custom_call.1} parent=27 // pred_check
          %p237 = pneg %p112
        $region38: #{tpu_custom_call.1} parent=27 // pred_check_branch
          %239 = sbr.rel (%p237) target = $region40
        $region39: #{tpu_custom_call.1} parent=27 // pred_region
          %s241 = ssub.s32 128, 128
          %242 = vsyncadd %s233, %s241
          %s243 = sadd.s32 %s27, %s26
          %s244 = smul.addr %s243, 128
          %s245 = scalar_lea.hbm %s2, %s244
          %s247 = sshll.u32 %s236, 4
          %s248 = int_to_ptr.vmem [resolvable:$true] %s247
          %250 = dma.vmem_to_hbm [thread:$0]  %s248, 128, %s245, %s233
        $region40: #{tpu_custom_call.1} parent=27 // pred_fallthru
          _
      $region28: #{tpu_custom_call.1} parent=5 // pred_fallthru
        _
      %p251 = scmp.le.s32.totalorder 2, %s17
      // Predicated region
      $region41: #{tpu_custom_call.1} parent=5 // pred_check
        %p252 = pneg %p251
      $region42: #{tpu_custom_call.1} parent=5 // pred_check_branch
        %254 = sbr.rel (%p252) target = $region44
      $region43: #{tpu_custom_call.1} parent=5 // pred_region
        %s255 = ssub.s32 %s17, 2
        // Predicated region
        $region45: #{tpu_custom_call.1} parent=43 // pred_check
          %p256 = pneg %p118
        $region46: #{tpu_custom_call.1} parent=43 // pred_check_branch
          %258 = sbr.rel (%p256) target = $region48
        $region47: #{tpu_custom_call.1} parent=43 // pred_region
          %s259 = sand.u32 %s103, 1
          %s260 = scalar_lea.sflag [#allocation4], %s259
          %s261 = sand.u32 %s103, 1
          %s262 = smul.addr %s261, 8
          %s263 = scalar_lea.vmem [#allocation7], %s262
          %264 = dma.done %s260, 128
        $region48: #{tpu_custom_call.1} parent=43 // pred_fallthru
          _
      $region44: #{tpu_custom_call.1} parent=5 // pred_fallthru
        _
    $region6: #{tpu_custom_call.1} parent=1 // loop_footer
      %s21 = sadd.s32 1, %s17
    $region7: #{tpu_custom_call.1} parent=1 // loop_footer_branch
      %16 = sbr.rel target = $region3
    $region8: #{tpu_custom_call.1} parent=1 // loop_exit
      _
    %265 = vsyncpa [#allocation3], 1
    %s266 = scalar_lea.sflag [#allocation3], 1
    %267 = vsyncpa %s266, 1
    %268 = vsyncpa [#allocation6], 1
    %s269 = scalar_lea.sflag [#allocation6], 1
    %270 = vsyncpa %s269, 1
    %271 = vsyncpa [#allocation4], 1
    %s272 = scalar_lea.sflag [#allocation4], 1
    %273 = vsyncpa %s272, 1

</llo_original>
